<compile_context>
chip_gen: v6e
topology: v6e:2x2x1
jax: 0.10.0
libtpu: 0.0.40
codegen_flags: <defaults>
</compile_context>

<pallas_src>
import functools

import jax
import jax.numpy as jnp
from jax.experimental import pallas as pl
from jax.experimental.pallas import tpu as pltpu


def _round_up(x, m):
    return ((x + m - 1) // m) * m


_VMEM_LIMIT_BYTES = 48 * 1024 * 1024   # > v5e/v6e scoped defaults, < v7x 64 MiB physical


# ----------------------------------------------------------------------------
# Kernel 1: masked sequence sum + mask count
#   num[b, :] = sum_s mask[b, s] * hidden[b, s, :]      (batched [1,S]@[S,H] on MXU)
#   den[b]    = sum_s mask[b, s]
# ----------------------------------------------------------------------------
def _masked_sum_kernel(h_ref, m_ref, num_ref, den_ref):
    m = m_ref[...]                                           # [bt, 1, S]
    num_ref[...] = jax.lax.dot_general(
        m, h_ref[...],
        dimension_numbers=(((2,), (1,)), ((0,), (0,))),
        preferred_element_type=jnp.float32)                  # [bt, 1, H]
    den_ref[...] = jnp.sum(m.astype(jnp.float32), axis=2, keepdims=True)   # [bt, 1, 1]


def masked_sum_pool(hidden, mask, *, vmem_resident_budget_bytes=32 << 20):
    """hidden: [B, S, H], mask: [B, S] -> (num [B,H] f32, den [B,1] f32). One HBM pass."""
    B, S, H = hidden.shape
    itemsize = hidden.dtype.itemsize
    # per batch row: hidden tile + mask row + num row + den scalar
    bytes_per_row = S * H * itemsize + S * itemsize + (H + 1) * 4
    bt = max(1, vmem_resident_budget_bytes // (2 * bytes_per_row))   # x2: double buffering
    if B >= 2:
        bt = min(bt, pl.cdiv(B, 2))        # >=2 grid steps -> 2-TC sharding on v7x
    bt = max(1, min(bt, B))
    if bt > 8:
        bt = (bt // 8) * 8                 # tidy sublane-multiple tiles when actually tiling

    mask3 = mask.astype(hidden.dtype).reshape(B, 1, S)       # lane-dense mask layout

    num, den = pl.pallas_call(
        _masked_sum_kernel,
        grid=(pl.cdiv(B, bt),),            # partial last block handled by Pallas, no HBM pad
        in_specs=[
            pl.BlockSpec((bt, S, H), lambda i: (i, 0, 0)),
            pl.BlockSpec((bt, 1, S), lambda i: (i, 0, 0)),
        ],
        out_specs=[
            pl.BlockSpec((bt, 1, H), lambda i: (i, 0, 0)),
            pl.BlockSpec((bt, 1, 1), lambda i: (i, 0, 0)),
        ],
        out_shape=(
            jax.ShapeDtypeStruct((B, 1, H), jnp.float32),
            jax.ShapeDtypeStruct((B, 1, 1), jnp.float32),
        ),
        compiler_params=pltpu.CompilerParams(
            dimension_semantics=("parallel",),
            vmem_limit_bytes=_VMEM_LIMIT_BYTES),
    )(hidden, mask3)
    return num.reshape(B, H), den.reshape(B, 1)


# ----------------------------------------------------------------------------
# Kernel 2 (fused): prelogits -> squared euclidean task scores -> argmin task ->
#                   prompt-extended pooled output -> classifier + task-range mask
# Single MXU pass over the [Bt, H] prelogits against RHS = [means^T | W].
# ----------------------------------------------------------------------------
def _select_classify_kernel(ct_padded, t_padded, pre_seq_len,
                            num_ref, den_ref, rhs_ref, m2_ref, psum_ref,
                            pw_ref, b_ref, keep_ref,
                            logits_ref, scores_ref, pooled_ref):
    CTp, Tp = ct_padded, t_padded
    C = CTp // Tp

    num = num_ref[...]                                       # [Bt, H] masked seq sums
    den = den_ref[...]                                       # [Bt, 1] mask counts
    x = num / jnp.maximum(den, 1e-9)                         # prelogits [Bt, H]

    # one MXU pass: y = x @ [means^T | W]
    y = jnp.dot(x, rhs_ref[...], preferred_element_type=jnp.float32)   # [Bt, CTp+Lp]
    xm = y[:, :CTp]                                          # lane-aligned (CTp % 128 == 0)
    xW = y[:, CTp:]                                          # [Bt, Lp]

    # squared distances; ||mu||^2 hoisted to the wrapper (padded tasks carry +1e30)
    x2 = jnp.sum(x * x, axis=1, keepdims=True)               # [Bt, 1]
    d2 = jnp.maximum(x2 + m2_ref[...] - 2.0 * xm, 0.0)       # [Bt, CTp]

    # min over classes: elementwise min of lane-aligned Tp-wide vreg views
    s2 = d2[:, 0:Tp]
    for c in range(1, C):
        s2 = jnp.minimum(s2, d2[:, c * Tp:(c + 1) * Tp])
    scores_ref[...] = jnp.sqrt(s2)                           # [Bt, Tp] lane-dense store

    # first-index argmin over (padded) tasks — padded tasks never win (+1e30 bias)
    col = jax.lax.broadcasted_iota(jnp.int32, s2.shape, 1)   # [Bt, Tp]
    minv = jnp.min(s2, axis=1, keepdims=True)
    idx = jnp.min(jnp.where(s2 == minv, col, jnp.int32(Tp)), axis=1, keepdims=True)
    onehot = (col == idx).astype(jnp.float32)                # [Bt, Tp]

    # one-hot "gathers" on the MXU (lane-dense K = Tp)
    p_sum = jnp.dot(onehot, psum_ref[...], preferred_element_type=jnp.float32)   # [Bt, H]
    pw = jnp.dot(onehot, pw_ref[...], preferred_element_type=jnp.float32)        # [Bt, Lp]
    keep = jnp.dot(onehot, keep_ref[...], preferred_element_type=jnp.float32)    # [Bt, Lp]

    denom = den + jnp.float32(pre_seq_len)                   # [Bt, 1]
    pooled_ref[...] = (p_sum + num) / denom                  # pooled [prompt ; sequence]

    # pooled @ W == (onehot @ (psum @ W) + den * (x @ W)) / (PSL + den)
    logits = (pw + den * xW) / denom + b_ref[...]
    logits_ref[...] = jnp.where(keep > 0.5, logits, jnp.float32(-10000.0))


def select_and_classify(num, den, rhs, m2, psum_p, pw_p, b_p, keep_p,
                        *, ct_padded, t_padded, pre_seq_len):
    """num: [B,H], den: [B,1], rhs: [H, CTp+Lp], m2: [1,CTp], psum_p/pw_p/keep_p: task-padded.
    Returns (logits [B,Lp], scores [B,Tp], pooled [B,H])."""
    B, H = num.shape
    CTp, Tp = ct_padded, t_padded
    Lp = rhs.shape[1] - CTp

    # batch tile: multiple of 8 (sublane-legal blocks), >=2 grid steps when B is big
    # enough; padding here only touches the tiny [B,H]/[B,1] arrays, never hidden.
    if B <= 8:
        bt = B
    else:
        bt = min(128, _round_up(pl.cdiv(B, 2), 8))
    Bp = _round_up(B, bt)
    if Bp != B:
        num = jnp.pad(num, ((0, Bp - B), (0, 0)))
        den = jnp.pad(den, ((0, Bp - B), (0, 0)), constant_values=1.0)

    row = lambda i: (i, 0)
    full = lambda i: (0, 0)

    logits, scores, pooled = pl.pallas_call(
        functools.partial(_select_classify_kernel, CTp, Tp, pre_seq_len),
        grid=(Bp // bt,),
        in_specs=[
            pl.BlockSpec((bt, H), row),            # num
            pl.BlockSpec((bt, 1), row),            # den
            pl.BlockSpec((H, CTp + Lp), full),     # merged RHS = [means^T | W]
            pl.BlockSpec((1, CTp), full),          # ||mu||^2 (+1e30 on padded tasks)
            pl.BlockSpec((Tp, H), full),           # per-task prompt token sums (padded)
            pl.BlockSpec((Tp, Lp), full),          # prompt_sums @ W (padded)
            pl.BlockSpec((1, Lp), full),           # classifier bias (padded)
            pl.BlockSpec((Tp, Lp), full),          # per-task keep mask (padded)
        ],
        out_specs=[
            pl.BlockSpec((bt, Lp), row),
            pl.BlockSpec((bt, Tp), row),
            pl.BlockSpec((bt, H), row),
        ],
        out_shape=(
            jax.ShapeDtypeStruct((Bp, Lp), jnp.float32),
            jax.ShapeDtypeStruct((Bp, Tp), jnp.float32),
            jax.ShapeDtypeStruct((Bp, H), jnp.float32),
        ),
        compiler_params=pltpu.CompilerParams(
            dimension_semantics=("parallel",),
            vmem_limit_bytes=_VMEM_LIMIT_BYTES),
    )(num, den, rhs, m2, psum_p, pw_p, b_p, keep_p)

    return logits[:B], scores[:B], pooled[:B]


# ----------------------------------------------------------------------------
# EPI forward (eval path: rep_mode='avg', query_mode='euclidean',
#              prompt_mode='prompt', prompt_fusion_mode != 'concat')
# ----------------------------------------------------------------------------
def epi_forward(params, input_ids, attention_mask):
    B, S = input_ids.shape
    T, PSL, H = params["prompts"].shape
    C = params["task_means"].shape[1]
    L = params["clf_w"].shape[0]

    # --- backbone stub: embedding lookup, identity encoder (see TODO above) ---
    last_hidden = params["embedding"][input_ids]                        # [B, S, H]

    # masked sum + mask count over the sequence (single HBM pass over hidden states)
    num, den = masked_sum_pool(last_hidden, attention_mask)             # [B,H], [B,1]

    # --- small parameter-derived tables, padded to lane-aligned widths (once/call) ---
    Tp = _round_up(T, 128)            # task axis -> lane boundary / lane-dense outputs
    Lp = _round_up(L, 128)            # label axis -> lane-dense logits
    CTp = C * Tp

    means = params["task_means"].astype(jnp.float32)                    # [T, C, H]
    mu_p = jnp.zeros((C, Tp, H), jnp.float32).at[:, :T, :].set(
        means.transpose(1, 0, 2)).reshape(CTp, H)                       # class-major, padded
    m2 = jnp.sum(mu_p * mu_p, axis=1)                                   # [CTp]
    pad_bias = jnp.where(jnp.arange(Tp) >= T, 1e30, 0.0).astype(jnp.float32)
    m2 = (m2 + jnp.tile(pad_bias, (C,))).reshape(1, CTp)                # padded tasks never win

    clf_wt = jnp.zeros((H, Lp), jnp.float32).at[:, :L].set(
        params["clf_w"].T.astype(jnp.float32))                          # [H, Lp]
    clf_b = jnp.zeros((1, Lp), jnp.float32).at[:, :L].set(
        params["clf_b"].reshape(1, L).astype(jnp.float32))
    rhs = jnp.concatenate([mu_p.T, clf_wt], axis=1)                     # [H, CTp + Lp]

    prompt_sums = params["prompts"].astype(jnp.float32).sum(axis=1)     # [T, H]
    psum_p = jnp.zeros((Tp, H), jnp.float32).at[:T].set(prompt_sums)
    pw_p = psum_p @ clf_wt                                              # [Tp, Lp]
    col = jnp.arange(L, dtype=jnp.int32)[None, :]
    task_keep = ((col >= params["task_starts"][:, None]) &
                 (col < params["task_ends"][:, None])).astype(jnp.float32)   # [T, L]
    keep_p = jnp.zeros((Tp, Lp), jnp.float32).at[:T, :L].set(task_keep)

    logits_p, scores_p, pooled = select_and_classify(
        num, den, rhs, m2, psum_p, pw_p, clf_b, keep_p,
        ct_padded=CTp, t_padded=Tp, pre_seq_len=PSL)

    scores = scores_p[:, :T]                                            # [B, T]
    logits = logits_p[:, :L]                                            # [B, L]
    # trivial XLA argmin over the real tasks (first-index ties, matches torch.min)
    indices = jnp.argmin(scores, axis=1).astype(jnp.int32)

    return {
        "logits": logits,
        "prelogits": pooled,
        "indices": indices,
        "scores_over_tasks": scores.T,     # torch stacks scores over tasks on dim 0
    }


# ----------------------------------------------------------------------------
# Pure-JAX reference for verification
# ----------------------------------------------------------------------------
def epi_forward_ref(params, input_ids, attention_mask):
    B, S = input_ids.shape
    T, PSL, H = params["prompts"].shape

    last_hidden = params["embedding"][input_ids]
    m = attention_mask.astype(jnp.float32)[..., None]
    prelogits = (last_hidden * m).sum(1) / jnp.maximum(m.sum(1), 1e-9)

    diff = prelogits[:, None, None, :] - params["task_means"][None]     # [B,T,C,H]
    dist = jnp.sqrt(jnp.maximum((diff * diff).sum(-1), 0.0))            # [B,T,C]
    scores_bt = dist.min(-1)                                            # [B,T]
    indices = jnp.argmin(scores_bt, axis=1)

    prompt_sel = params["prompts"][indices]
    emb = jnp.concatenate([prompt_sel, params["embedding"][input_ids]], axis=1)
    full_mask = jnp.concatenate(
        [jnp.ones((B, PSL)), attention_mask.astype(jnp.float32)], axis=1)[..., None]
    pooled = (emb * full_mask).sum(1) / jnp.maximum(full_mask.sum(1), 1e-9)

    logits = pooled @ params["clf_w"].T + params["clf_b"]
    L = logits.shape[1]
    col = jnp.arange(L)[None, :]
    starts = params["task_starts"][indices][:, None]
    ends = params["task_ends"][indices][:, None]
    logits = jnp.where((col >= starts) & (col < ends), logits, -10000.0)
    return logits, scores_bt.T, indices, pooled


# ----------------------------------------------------------------------------
if __name__ == "__main__":
    B, S, H = 2, 8, 32          # batch, seq, hidden_size
    PSL = 4                     # pre_seq_len
    T, C = 3, 2                 # num_tasks, classes per task
    L = T * C                   # num_labels
    VOCAB = 50

    key = jax.random.PRNGKey(0)
    ks = jax.random.split(key, 6)

    params = {
        "embedding": jax.random.normal(ks[0], (VOCAB, H), jnp.float32) * 0.5,
        "prompts": jax.random.normal(ks[1], (T, PSL, H), jnp.float32) * 0.5,
        "task_means": jax.random.normal(ks[2], (T, C, H), jnp.float32) * 0.5,
        "clf_w": jax.random.normal(ks[3], (L, H), jnp.float32) * 0.1,
        "clf_b": jax.random.normal(ks[4], (L,), jnp.float32) * 0.1,
        "task_starts": jnp.array([C * t for t in range(T)], jnp.int32),
        "task_ends": jnp.array([C * (t + 1) for t in range(T)], jnp.int32),
    }

    input_ids = jax.random.randint(ks[5], (B, S), 0, VOCAB, jnp.int32)
    attention_mask = jnp.ones((B, S), jnp.int32).at[1, S - 2:].set(0)   # ragged mask

    out = epi_forward(params, input_ids, attention_mask)
    jax.block_until_ready(out)

    ref_logits, ref_scores, ref_idx, ref_pooled = epi_forward_ref(
        params, input_ids, attention_mask)

    assert jnp.allclose(out["prelogits"], ref_pooled, atol=1e-4), "pooled mismatch"
    assert jnp.allclose(out["scores_over_tasks"], ref_scores, atol=1e-4), "scores mismatch"
    assert jnp.array_equal(out["indices"], ref_idx.astype(jnp.int32)), "indices mismatch"
    assert jnp.allclose(out["logits"], ref_logits, atol=1e-3), "logits mismatch"

    print("KERNEL_OK")
</pallas_src>

<mosaic_0001>
module attributes {stable_mosaic.version = 11 : i64} {
  func.func @_masked_sum_kernel(%arg0: i32, %arg1: memref<1x8x32xf32, #tpu.memory_space<vmem>>, %arg2: memref<1x1x8xf32, #tpu.memory_space<vmem>>, %arg3: memref<1x1x32xf32, #tpu.memory_space<vmem>>, %arg4: memref<1x1x1xf32, #tpu.memory_space<vmem>>) attributes {dimension_semantics = [#tpu.dimension_semantics<parallel>], iteration_bounds = array<i64: 2>, scalar_prefetch = 0 : i64, scratch_operands = 0 : i64, tpu.core_type = #tpu.core_type<tc>, window_params = [{transform_indices = @transform_0, window_bounds = array<i64: 1, 8, 32>}, {transform_indices = @transform_1, window_bounds = array<i64: 1, 1, 8>}, {transform_indices = @transform_2, window_bounds = array<i64: 1, 1, 32>}, {transform_indices = @transform_3, window_bounds = array<i64: 1, 1, 1>}]} {
    %c0 = arith.constant 0 : index
    %c0_0 = arith.constant 0 : index
    %c0_1 = arith.constant 0 : index
    %0 = vector.load %arg2[%c0, %c0_0, %c0_1] : memref<1x1x8xf32, #tpu.memory_space<vmem>>, vector<1x1x8xf32>
    %c0_2 = arith.constant 0 : index
    %c0_3 = arith.constant 0 : index
    %c0_4 = arith.constant 0 : index
    %1 = vector.load %arg1[%c0_2, %c0_3, %c0_4] : memref<1x8x32xf32, #tpu.memory_space<vmem>>, vector<1x8x32xf32>
    %cst = arith.constant dense<0.000000e+00> : vector<1x1x32xf32>
    %2 = tpu.matmul %0, %1, %cst {dimension_numbers = #tpu.dot_dimension_numbers<[2], [1], [1], [2], [0, 0, 0, 1, 1, 2], [0], [0]>} : vector<1x1x8xf32>, vector<1x8x32xf32>, vector<1x1x32xf32> -> vector<1x1x32xf32>
    %c0_5 = arith.constant 0 : index
    %c0_6 = arith.constant 0 : index
    %c0_7 = arith.constant 0 : index
    %3 = vector.load %arg3[%c0_5, %c0_6, %c0_7] : memref<1x1x32xf32, #tpu.memory_space<vmem>>, vector<1x1x32xf32>
    tpu.vector_store %arg3[%c0_5, %c0_6, %c0_7], %2 {strides = array<i32>} : memref<1x1x32xf32, #tpu.memory_space<vmem>>, vector<1x1x32xf32>,
    %cst_8 = arith.constant dense<0.000000e+00> : vector<1x1xf32>
    %4 = vector.multi_reduction <add>, %0, %cst_8 [2] : vector<1x1x8xf32> to vector<1x1xf32>
    %5 = vector.shape_cast %4 : vector<1x1xf32> to vector<1x1x1xf32>
    %c0_9 = arith.constant 0 : index
    %c0_10 = arith.constant 0 : index
    %c0_11 = arith.constant 0 : index
    %6 = vector.load %arg4[%c0_9, %c0_10, %c0_11] : memref<1x1x1xf32, #tpu.memory_space<vmem>>, vector<1x1x1xf32>
    tpu.vector_store %arg4[%c0_9, %c0_10, %c0_11], %5 {strides = array<i32>} : memref<1x1x1xf32, #tpu.memory_space<vmem>>, vector<1x1x1xf32>,
    return
  }
  func.func @transform_0(%arg0: i32) -> (i32, i32, i32) {
    %c0_i32 = arith.constant 0 : i32
    %c0_i32_0 = arith.constant 0 : i32
    %c0_i32_1 = arith.constant 0 : i32
    return %arg0, %c0_i32, %c0_i32_0 : i32, i32, i32
  }
  func.func @transform_1(%arg0: i32) -> (i32, i32, i32) {
    %c0_i32 = arith.constant 0 : i32
    %c0_i32_0 = arith.constant 0 : i32
    %c0_i32_1 = arith.constant 0 : i32
    return %arg0, %c0_i32, %c0_i32_0 : i32, i32, i32
  }
  func.func @transform_2(%arg0: i32) -> (i32, i32, i32) {
    %c0_i32 = arith.constant 0 : i32
    %c0_i32_0 = arith.constant 0 : i32
    %c0_i32_1 = arith.constant 0 : i32
    return %arg0, %c0_i32, %c0_i32_0 : i32, i32, i32
  }
  func.func @transform_3(%arg0: i32) -> (i32, i32, i32) {
    %c0_i32 = arith.constant 0 : i32
    %c0_i32_0 = arith.constant 0 : i32
    %c0_i32_1 = arith.constant 0 : i32
    return %arg0, %c0_i32, %c0_i32_0 : i32, i32, i32
  }
}

</mosaic_0001>

<llo_original>
// kernel: tpu_custom_call.1
$region0: #{tpu_custom_call.1}
  #allocation0 [shape = 'u32[]', space=smem, size = 0x4, offset = 0x4, fixed_abs, tag = 'smem constant byte address 0x4 - core index']
  #allocation1 [shape = 'u32[144,128]{1,0:T(1,128)}', space=vmem, size = 0x12000, scoped, tag = 'internal scratch']
  %s0 = inlined_call_operand.hbm [shape: f32[2,8,32], index: 0, kind: input, shape index: {}]
  %s1 = inlined_call_operand.hbm [shape: f32[2,1,8], index: 1, kind: input, shape index: {}]
  %s2 = inlined_call_operand.hbm [shape: f32[2,1,32], index: 2, kind: output, shape index: {0}]
  %s3 = inlined_call_operand.vmem [shape: f32[2,1,1], index: 3, kind: output, shape index: {1}]
  %4 = xla_tuple %s2, %s3
  %s5 = sld [smem:[#allocation0]]
  $region57: #{tpu_custom_call.1} parent=0
    _
  %s7 = ssub.s32 1, %s5
  %s8 = scalar_select 0, %s7, %s5
  $region1: #{tpu_custom_call.1} parent=0
    #allocation2 [shape = 'u8[8192]{0}', space=vmem, size = 0x2000, scoped, tag = 'input window, operand 0']
    #allocation3 [shape = 's32[2]{0}', space=sflag, size = 0x8, scoped, tag = 'scoped memory for tpu_custom_call.1']
    #allocation4 [shape = 's32[2]{0}', space=sflag, size = 0x8, scoped, tag = 'scoped memory for tpu_custom_call.1']
    #allocation5 [shape = 'u8[1024]{0}', space=vmem, size = 0x400, scoped, tag = 'input window, operand 1']
    #allocation6 [shape = 's32[2]{0}', space=sflag, size = 0x8, scoped, tag = 'scoped memory for tpu_custom_call.1']
    #allocation7 [shape = 'u8[1024]{0}', space=vmem, size = 0x400, scoped, tag = 'output window, operand 0']
    %9 = vsyncpa [#allocation3], 0
    %s10 = scalar_lea.sflag [#allocation3], 1
    %11 = vsyncpa %s10, 0
    %12 = vsyncpa [#allocation6], 0
    %s13 = scalar_lea.sflag [#allocation6], 1
    %14 = vsyncpa %s13, 0
    %15 = vsyncpa [#allocation4], 0
    %s16 = scalar_lea.sflag [#allocation4], 1
    %17 = vsyncpa %s16, 0
    loop: start=0, step=1, limit=4
    $region2: #{tpu_custom_call.1} parent=1 // loop_pre_header
      _
    $region3: #{tpu_custom_call.1} parent=1 // loop_header
      %s19 = sphi 0, %s23
      %p20 = scmp.ge.s32.totalorder %s19, 4
      %s29 = sphi 0, %s31
      %s32 = sphi 0, %s29
      %s33 = sphi 0, %s32
      %s49 = sphi 0, %s33
      %s55 = sphi 0, %s57
      %s58 = sphi 0, %s55
      %s59 = sphi 0, %s58
      %s75 = sphi 0, %s59
      %s81 = sphi 0, %s83
      %s84 = sphi 0, %s81
      %s85 = sphi 0, %s84
      %s101 = sphi 0, %s85
      %s107 = sphi 0, %s109
      %s110 = sphi 0, %s107
      %s111 = sphi 0, %s110
      %s127 = sphi 0, %s111
    $region4: #{tpu_custom_call.1} parent=1 // loop_header_branch
      %22 = sbr.rel (%p20) target = $region8
    $region5: #{tpu_custom_call.1} parent=1 // loop_body
      %s24 = ssub.s32 %s19, 1
      %s25 = ssub.s32 %s19, 2
      %s26 = sadd.s32 %s19, 1
      %s27 = ssub.s32 %s19, %s26
      %p28 = scmp.eq.s32.totalorder %s27, 0
      %s30 = sadd.s32 %s29, 1
      %s31 = scalar_select %p28, %s29, %s30
      %p34 = pneg %p28
      %p35 = scmp.eq.s32.totalorder %s19, 1
      %p36 = por %p34, %p35
      %p37 = scmp.ne.s32.totalorder %s29, %s32
      %p38 = scmp.eq.s32.totalorder %s19, 0
      %p39 = por %p37, %p38
      %p40 = scmp.ne.s32.totalorder %s29, %s32
      %p41 = scmp.eq.s32.totalorder %s24, 1
      %p42 = por %p40, %p41
      %p43 = scmp.ne.s32.totalorder %s32, %s33
      %p44 = scmp.eq.s32.totalorder %s24, 0
      %p45 = por %p43, %p44
      %p46 = scmp.ne.s32.totalorder %s32, %s33
      %p47 = scmp.eq.s32.totalorder %s25, 1
      %p48 = por %p46, %p47
      %p50 = scmp.ne.s32.totalorder %s33, %s49
      %p51 = scmp.eq.s32.totalorder %s25, 0
      %p52 = por %p50, %p51
      %s53 = ssub.s32 %s19, %s26
      %p54 = scmp.eq.s32.totalorder %s53, 0
      %s56 = sadd.s32 %s55, 1
      %s57 = scalar_select %p54, %s55, %s56
      %p60 = pneg %p54
      %p61 = scmp.eq.s32.totalorder %s19, 1
      %p62 = por %p60, %p61
      %p63 = scmp.ne.s32.totalorder %s55, %s58
      %p64 = scmp.eq.s32.totalorder %s19, 0
      %p65 = por %p63, %p64
      %p66 = scmp.ne.s32.totalorder %s55, %s58
      %p67 = scmp.eq.s32.totalorder %s24, 1
      %p68 = por %p66, %p67
      %p69 = scmp.ne.s32.totalorder %s58, %s59
      %p70 = scmp.eq.s32.totalorder %s24, 0
      %p71 = por %p69, %p70
      %p72 = scmp.ne.s32.totalorder %s58, %s59
      %p73 = scmp.eq.s32.totalorder %s25, 1
      %p74 = por %p72, %p73
      %p76 = scmp.ne.s32.totalorder %s59, %s75
      %p77 = scmp.eq.s32.totalorder %s25, 0
      %p78 = por %p76, %p77
      %s79 = ssub.s32 %s19, %s26
      %p80 = scmp.eq.s32.totalorder %s79, 0
      %s82 = sadd.s32 %s81, 1
      %s83 = scalar_select %p80, %s81, %s82
      %p86 = pneg %p80
      %p87 = scmp.eq.s32.totalorder %s19, 1
      %p88 = por %p86, %p87
      %p89 = scmp.ne.s32.totalorder %s81, %s84
      %p90 = scmp.eq.s32.totalorder %s19, 0
      %p91 = por %p89, %p90
      %p92 = scmp.ne.s32.totalorder %s81, %s84
      %p93 = scmp.eq.s32.totalorder %s24, 1
      %p94 = por %p92, %p93
      %p95 = scmp.ne.s32.totalorder %s84, %s85
      %p96 = scmp.eq.s32.totalorder %s24, 0
      %p97 = por %p95, %p96
      %p98 = scmp.ne.s32.totalorder %s84, %s85
      %p99 = scmp.eq.s32.totalorder %s25, 1
      %p100 = por %p98, %p99
      %p102 = scmp.ne.s32.totalorder %s85, %s101
      %p103 = scmp.eq.s32.totalorder %s25, 0
      %p104 = por %p102, %p103
      %s105 = ssub.s32 %s19, %s26
      %p106 = scmp.eq.s32.totalorder %s105, 0
      %s108 = sadd.s32 %s107, 1
      %s109 = scalar_select %p106, %s107, %s108
      %p112 = pneg %p106
      %p113 = scmp.eq.s32.totalorder %s19, 1
      %p114 = por %p112, %p113
      %p115 = scmp.ne.s32.totalorder %s107, %s110
      %p116 = scmp.eq.s32.totalorder %s19, 0
      %p117 = por %p115, %p116
      %p118 = scmp.ne.s32.totalorder %s107, %s110
      %p119 = scmp.eq.s32.totalorder %s24, 1
      %p120 = por %p118, %p119
      %p121 = scmp.ne.s32.totalorder %s110, %s111
      %p122 = scmp.eq.s32.totalorder %s24, 0
      %p123 = por %p121, %p122
      %p124 = scmp.ne.s32.totalorder %s110, %s111
      %p125 = scmp.eq.s32.totalorder %s25, 1
      %p126 = por %p124, %p125
      %p128 = scmp.ne.s32.totalorder %s111, %s127
      %p129 = scmp.eq.s32.totalorder %s25, 0
      %p130 = por %p128, %p129
      %p131 = scmp.le.s32.totalorder 1, %s19
      %p132 = scmp.lt.s32.totalorder %s19, 3
      %p133 = pnand %p131, %p132
      %p134 = pneg %p133
      // Predicated region
      $region9: #{tpu_custom_call.1} parent=5 // pred_check
        _
      $region10: #{tpu_custom_call.1} parent=5 // pred_check_branch
        %136 = sbr.rel (%p133) target = $region12
      $region11: #{tpu_custom_call.1} parent=5 // pred_region
        %s137 = ssub.s32 %s19, 1
      $region12: #{tpu_custom_call.1} parent=5 // pred_fallthru
        _
      %p138 = scmp.lt.s32.totalorder %s19, 2
      // Predicated region
      $region13: #{tpu_custom_call.1} parent=5 // pred_check
        %p139 = pneg %p138
      $region14: #{tpu_custom_call.1} parent=5 // pred_check_branch
        %141 = sbr.rel (%p139) target = $region16
      $region15: #{tpu_custom_call.1} parent=5 // pred_region
        // Predicated region
        $region17: #{tpu_custom_call.1} parent=15 // pred_check
          %p142 = pneg %p39
        $region18: #{tpu_custom_call.1} parent=15 // pred_check_branch
          %144 = sbr.rel (%p142) target = $region20
        $region19: #{tpu_custom_call.1} parent=15 // pred_region
          %s145 = sand.u32 %s29, 1
          %s146 = scalar_lea.sflag [#allocation3], %s145
          %s147 = sand.u32 %s29, 1
          %s148 = smul.addr %s147, 8
          %s149 = scalar_lea.vmem [#allocation2], %s148
          %s151 = ssub.s32 128, 128
          %152 = vsyncadd %s146, %s151
          %s153 = smul.addr %s19, 128
          %s154 = scalar_lea.hbm %s0, %s153
          %s156 = sshll.u32 %s149, 4
          %s157 = int_to_ptr.vmem [resolvable:$true] %s156
          %159 = dma.hbm_to_vmem [thread:$0]  %s154, 128, %s157, %s146
        $region20: #{tpu_custom_call.1} parent=15 // pred_fallthru
          _
        // Predicated region
        $region21: #{tpu_custom_call.1} parent=15 // pred_check
          %p160 = pneg %p65
        $region22: #{tpu_custom_call.1} parent=15 // pred_check_branch
          %162 = sbr.rel (%p160) target = $region24
        $region23: #{tpu_custom_call.1} parent=15 // pred_region
          %s163 = sand.u32 %s55, 1
          %s164 = scalar_lea.sflag [#allocation6], %s163
          %s165 = sand.u32 %s55, 1
          %s166 = scalar_lea.vmem [#allocation5], %s165
          %s168 = ssub.s32 16, 16
          %169 = vsyncadd %s164, %s168
          %s170 = smul.addr %s19, 16
          %s171 = scalar_lea.hbm %s1, %s170
          %s173 = sshll.u32 %s166, 4
          %s174 = int_to_ptr.vmem [resolvable:$true] %s173
          %176 = dma.hbm_to_vmem [thread:$0]  %s171, 16, %s174, %s164
        $region24: #{tpu_custom_call.1} parent=15 // pred_fallthru
          _
      $region16: #{tpu_custom_call.1} parent=5 // pred_fallthru
        _
      %p177 = scmp.le.s32.totalorder 1, %s19
      %p178 = scmp.lt.s32.totalorder %s19, 3
      %p179 = pnand %p177, %p178
      %p180 = pneg %p179
      // Predicated region
      $region25: #{tpu_custom_call.1} parent=5 // pred_check
        _
      $region26: #{tpu_custom_call.1} parent=5 // pred_check_branch
        %182 = sbr.rel (%p179) target = $region28
      $region27: #{tpu_custom_call.1} parent=5 // pred_region
        %s183 = ssub.s32 %s19, 1
        %s184 = sand.u32 %s32, 1
        %s185 = scalar_lea.sflag [#allocation3], %s184
        %s186 = sand.u32 %s32, 1
        %s187 = smul.addr %s186, 8
        %s188 = scalar_lea.vmem [#allocation2], %s187
        // Predicated region
        $region29: #{tpu_custom_call.1} parent=27 // pred_check
          %p189 = pneg %p45
        $region30: #{tpu_custom_call.1} parent=27 // pred_check_branch
          %191 = sbr.rel (%p189) target = $region32
        $region31: #{tpu_custom_call.1} parent=27 // pred_region
          %192 = dma.done %s185, 128
        $region32: #{tpu_custom_call.1} parent=27 // pred_fallthru
          _
        %s193 = sand.u32 %s58, 1
        %s194 = scalar_lea.sflag [#allocation6], %s193
        %s195 = sand.u32 %s58, 1
        %s196 = scalar_lea.vmem [#allocation5], %s195
        // Predicated region
        $region33: #{tpu_custom_call.1} parent=27 // pred_check
          %p197 = pneg %p71
        $region34: #{tpu_custom_call.1} parent=27 // pred_check_branch
          %199 = sbr.rel (%p197) target = $region36
        $region35: #{tpu_custom_call.1} parent=27 // pred_region
          %200 = dma.done %s194, 16
        $region36: #{tpu_custom_call.1} parent=27 // pred_fallthru
          _
        %s201 = sand.u32 %s32, 1
        %s202 = scalar_lea.sflag [#allocation3], %s201
        %s203 = sand.u32 %s32, 1
        %s204 = smul.addr %s203, 8
        %s205 = scalar_lea.vmem [#allocation2], %s204
        %p206 = pneg %p45
        %p207 = pneg %p42
        %s208 = sand.u32 %s58, 1
        %s209 = scalar_lea.sflag [#allocation6], %s208
        %s210 = sand.u32 %s58, 1
        %s211 = scalar_lea.vmem [#allocation5], %s210
        %p212 = pneg %p71
        %p213 = pneg %p68
        %p214 = pneg %p97
        %p215 = pneg %p94
        %s216 = sand.u32 %s84, 1
        %s217 = scalar_lea.sflag [#allocation4], %s216
        %s218 = sand.u32 %s84, 1
        %s219 = scalar_lea.vmem [#allocation7], %s218
        %p220 = pneg %p123
        %p221 = pneg %p120
        %p222 = scmp.lt.s32.totalorder %s24, 1
        %s223 = scalar_select %p222, %s24, 1
        %s224 = scalar_lea.vmem %s3, %s223
        %p225 = scmp.lt.s32.totalorder %s24, 1
        %s226 = scalar_select %p225, %s24, 1
        %s227 = scalar_lea.vmem %s3, %s226
        %v228 = vld [vmem:[%s196] sm:$0x1]
        %v229 = vld [vmem:[%s188] sm:$0xff]
        %vm230 = vcmask 64512
        %v232 = vsel %vm230, %v228, 0
        %234 = vmatprep.subr.mxu0 0.0
        %235 = vmatpush1.msra.mxu0 0.0
        %236 = vmatprep.subr.mxu0 0.0
        %237 = vmatpush1.msra.mxu0 0.0
        %238 = vmatprep.subr.mxu0 0.0
        %239 = vmatpush1.msra.mxu0 0.0
        %240 = vmatprep.subr.mxu0 0.0
        %241 = vmatpush1.msra.mxu0 0.0
        %242 = vmatprep.subr.mxu0 0.0
        %243 = vmatpush1.msra.mxu0 0.0
        %244 = vmatprep.subr.mxu0 0.0
        %245 = vmatpush1.msra.mxu0 0.0
        %246 = vmatprep.subr.mxu0 0.0
        %247 = vmatpush1.msra.mxu0 0.0
        %248 = vmatprep.subr.mxu0 0.0
        %249 = vmatpush1.msra.mxu0 0.0
        %250 = vmatprep.subr.mxu0 0.0
        %251 = vmatpush1.msra.mxu0 0.0
        %252 = vmatprep.subr.mxu0 0.0
        %253 = vmatpush1.msra.mxu0 0.0
        %254 = vmatprep.subr.mxu0 0.0
        %255 = vmatpush1.msra.mxu0 0.0
        %256 = vmatprep.subr.mxu0 0.0
        %257 = vmatpush1.msra.mxu0 0.0
        %258 = vmatprep.subr.mxu0 0.0
        %259 = vmatpush1.msra.mxu0 0.0
        %260 = vmatprep.subr.mxu0 0.0
        %261 = vmatpush1.msra.mxu0 0.0
        %262 = vmatprep.subr.mxu0 0.0
        %263 = vmatpush1.msra.mxu0 0.0
        %264 = vmatprep.subr.mxu0 0.0
        %265 = vmatpush1.msra.mxu0 %v229
        %266 = vmatprep.subr.mxu0 0.0
        %267 = vmatpush2.msra.mxu0 0.0
        %268 = vmatprep.subr.mxu0 0.0
        %269 = vmatpush2.msra.mxu0 0.0
        %270 = vmatprep.subr.mxu0 0.0
        %271 = vmatpush2.msra.mxu0 0.0
        %272 = vmatprep.subr.mxu0 0.0
        %273 = vmatpush2.msra.mxu0 0.0
        %274 = vmatprep.subr.mxu0 0.0
        %275 = vmatpush2.msra.mxu0 0.0
        %276 = vmatprep.subr.mxu0 0.0
        %277 = vmatpush2.msra.mxu0 0.0
        %278 = vmatprep.subr.mxu0 0.0
        %279 = vmatpush2.msra.mxu0 0.0
        %280 = vmatprep.subr.mxu0 0.0
        %281 = vmatpush2.msra.mxu0 0.0
        %282 = vmatprep.subr.mxu0 0.0
        %283 = vmatpush2.msra.mxu0 0.0
        %284 = vmatprep.subr.mxu0 0.0
        %285 = vmatpush2.msra.mxu0 0.0
        %286 = vmatprep.subr.mxu0 0.0
        %287 = vmatpush2.msra.mxu0 0.0
        %288 = vmatprep.subr.mxu0 0.0
        %289 = vmatpush2.msra.mxu0 0.0
        %290 = vmatprep.subr.mxu0 0.0
        %291 = vmatpush2.msra.mxu0 0.0
        %292 = vmatprep.subr.mxu0 0.0
        %293 = vmatpush2.msra.mxu0 0.0
        %294 = vmatprep.subr.mxu0 0.0
        %295 = vmatpush2.msra.mxu0 0.0
        %296 = vmatprep.subr.mxu0 0.0
        %297 = vmatpush2.msra.mxu0 0.0
        %298 = vmatprep.mubr.f32.mxu0 0.0
        %299 = vmatmul.mubr.f32.gmra.mxu0 %v232
        %v300 = vpop.f32.mrf.mxu0
        %v301 = vadd.f32 0.0, %v300
        %v302 = vpop.f32.mrf.mxu0
        %303 = vdwg.mxu0
        %vm304 = vcmask 253952
        %305 = vst.msk [vmem:[%s219] sm:$0x1] %vm304, %v301
        %vm306 = vcmask 57344
        %v307 = vsel %vm306, %v228, 0.0
        %308 = vadd.xlane.f32.xlu0 %v307
        %v309 = vpop.xlane.xlu0 %308
        %vm310 = vcmask 0
        %311 = vst.msk [vmem:[%s227] sm:$0x1] %vm310, %v309
        %s312 = sand.u32 %s84, 1
        %s313 = scalar_lea.sflag [#allocation4], %s312
        %s314 = sand.u32 %s84, 1
        %s315 = scalar_lea.vmem [#allocation7], %s314
        %p316 = scmp.lt.s32.totalorder %s24, 1
        %s317 = scalar_select %p316, %s24, 1
        %s318 = scalar_lea.vmem %s3, %s317
        // Predicated region
        $region37: #{tpu_custom_call.1} parent=27 // pred_check
          %p319 = pneg %p94
        $region38: #{tpu_custom_call.1} parent=27 // pred_check_branch
          %321 = sbr.rel (%p319) target = $region40
        $region39: #{tpu_custom_call.1} parent=27 // pred_region
          %s323 = ssub.s32 16, 16
          %324 = vsyncadd %s313, %s323
          %s325 = smul.addr %s24, 16
          %s326 = scalar_lea.hbm %s2, %s325
          %s328 = sshll.u32 %s315, 4
          %s329 = int_to_ptr.vmem [resolvable:$true] %s328
          %331 = dma.vmem_to_hbm [thread:$0]  %s329, 16, %s326, %s313
        $region40: #{tpu_custom_call.1} parent=27 // pred_fallthru
          _
        // Predicated region
        $region41: #{tpu_custom_call.1} parent=27 // pred_check
          %p332 = pneg %p120
        $region42: #{tpu_custom_call.1} parent=27 // pred_check_branch
          %334 = sbr.rel (%p332) target = $region44
        $region43: #{tpu_custom_call.1} parent=27 // pred_region
          _
        $region44: #{tpu_custom_call.1} parent=27 // pred_fallthru
          _
      $region28: #{tpu_custom_call.1} parent=5 // pred_fallthru
        _
      %p335 = scmp.le.s32.totalorder 2, %s19
      // Predicated region
      $region45: #{tpu_custom_call.1} parent=5 // pred_check
        %p336 = pneg %p335
      $region46: #{tpu_custom_call.1} parent=5 // pred_check_branch
        %338 = sbr.rel (%p336) target = $region48
      $region47: #{tpu_custom_call.1} parent=5 // pred_region
        %s339 = ssub.s32 %s19, 2
        // Predicated region
        $region49: #{tpu_custom_call.1} parent=47 // pred_check
          %p340 = pneg %p100
        $region50: #{tpu_custom_call.1} parent=47 // pred_check_branch
          %342 = sbr.rel (%p340) target = $region52
        $region51: #{tpu_custom_call.1} parent=47 // pred_region
          %s343 = sand.u32 %s85, 1
          %s344 = scalar_lea.sflag [#allocation4], %s343
          %s345 = sand.u32 %s85, 1
          %s346 = scalar_lea.vmem [#allocation7], %s345
          %347 = dma.done %s344, 16
        $region52: #{tpu_custom_call.1} parent=47 // pred_fallthru
          _
        // Predicated region
        $region53: #{tpu_custom_call.1} parent=47 // pred_check
          %p348 = pneg %p126
        $region54: #{tpu_custom_call.1} parent=47 // pred_check_branch
          %350 = sbr.rel (%p348) target = $region56
        $region55: #{tpu_custom_call.1} parent=47 // pred_region
          %p351 = scmp.lt.s32.totalorder %s25, 1
          %s352 = scalar_select %p351, %s25, 1
          %s353 = scalar_lea.vmem %s3, %s352
        $region56: #{tpu_custom_call.1} parent=47 // pred_fallthru
          _
      $region48: #{tpu_custom_call.1} parent=5 // pred_fallthru
        _
    $region6: #{tpu_custom_call.1} parent=1 // loop_footer
      %s23 = sadd.s32 1, %s19
    $region7: #{tpu_custom_call.1} parent=1 // loop_footer_branch
      %18 = sbr.rel target = $region3
    $region8: #{tpu_custom_call.1} parent=1 // loop_exit
      _
    %354 = vsyncpa [#allocation3], 1
    %s355 = scalar_lea.sflag [#allocation3], 1
    %356 = vsyncpa %s355, 1
    %357 = vsyncpa [#allocation6], 1
    %s358 = scalar_lea.sflag [#allocation6], 1
    %359 = vsyncpa %s358, 1
    %360 = vsyncpa [#allocation4], 1
    %s361 = scalar_lea.sflag [#allocation4], 1
    %362 = vsyncpa %s361, 1

</llo_original>
